<compile_context>
chip_gen: v7x
topology: tpu7x:2x2x1
jax: 0.10.0
libtpu: 0.0.40
codegen_flags: <defaults>
</compile_context>

<pallas_src>
import jax
import jax.numpy as jnp
from jax.experimental import pallas as pl
from jax.experimental.pallas import tpu as pltpu

INPUT_SIZE = 60
OUTPUT_SIZE = 10
OUT_PAD = 16           # narrow, real output width rounded up a touch
TB_MAX = 8192          # batch tile cap (VMEM-safe on v5e/v6e/v7x at default limits)


def _round_up(x, m):
    return ((x + m - 1) // m) * m


def _choose_batch_tiling(B):
    """Pick (tile_rows, padded_rows): even split, <=TB_MAX rows/tile, >=2 tiles
    when possible (v7x megacore), and near-zero batch-padding waste."""
    b_sub = _round_up(max(B, 1), 8)            # sublane alignment
    n_tiles = -(-b_sub // TB_MAX)              # ceil
    if n_tiles == 1 and b_sub >= 16:
        n_tiles = 2                            # >=2 grid steps -> both v7x TCs busy
    tb = _round_up(-(-b_sub // n_tiles), 8)
    b_pad = n_tiles * tb
    return tb, b_pad


def _linear_kernel(x_ref, w_ref, b_ref, o_ref):
    # x: (TB, 60) [bf16 or f32], w: (60, 16), b: (1, 16) f32 -> o: (TB, 16) f32
    acc = jnp.dot(x_ref[...], w_ref[...],
                  preferred_element_type=jnp.float32)   # MXU, f32 accumulation
    o_ref[...] = (acc + b_ref[...]).astype(o_ref.dtype)


def svm_forward(x, weight, bias, *, input_dtype=jnp.bfloat16):
    """x: (B, 60) f32; weight: (10, 60) f32 (PyTorch layout); bias: (10,) f32.

    input_dtype controls the streamed dtype of x / weight (bf16 halves the
    dominant HBM stream; float32 reproduces nn.Linear numerics exactly).
    Accumulation and the output are always f32.
    """
    B = x.shape[0]

    # --- wrapper-side layout plumbing (narrow N, batch padding) ---
    wt = jnp.zeros((INPUT_SIZE, OUT_PAD), dtype=input_dtype)
    wt = wt.at[:, :OUTPUT_SIZE].set(weight.T.astype(input_dtype))
    b2 = jnp.zeros((1, OUT_PAD), dtype=jnp.float32)
    b2 = b2.at[:, :OUTPUT_SIZE].set(bias.astype(jnp.float32))

    x_cast = x.astype(input_dtype)
    tb, b_pad = _choose_batch_tiling(B)
    if b_pad != B:
        x_p = jnp.zeros((b_pad, INPUT_SIZE), dtype=input_dtype)
        x_p = x_p.at[:B, :].set(x_cast)
    else:
        x_p = x_cast

    grid = (b_pad // tb,)

    in_bytes = jnp.dtype(input_dtype).itemsize
    cost = pl.CostEstimate(
        flops=2 * b_pad * INPUT_SIZE * OUT_PAD,
        transcendentals=0,
        bytes_accessed=(b_pad * INPUT_SIZE * in_bytes          # x stream
                        + INPUT_SIZE * OUT_PAD * in_bytes      # weight (resident)
                        + OUT_PAD * 4                          # bias
                        + b_pad * OUT_PAD * 4),                # output writeback
    )

    out_padded = pl.pallas_call(
        _linear_kernel,
        out_shape=jax.ShapeDtypeStruct((b_pad, OUT_PAD), jnp.float32),
        grid=grid,
        in_specs=[
            # x stream: tiled over batch, double-buffered by the pipeline.
            pl.BlockSpec((tb, INPUT_SIZE), lambda i: (i, 0)),
            # weight / bias: constant index_map -> stay VMEM-resident.
            pl.BlockSpec((INPUT_SIZE, OUT_PAD), lambda i: (0, 0)),
            pl.BlockSpec((1, OUT_PAD), lambda i: (0, 0)),
        ],
        out_specs=pl.BlockSpec((tb, OUT_PAD), lambda i: (i, 0)),
        compiler_params=pltpu.CompilerParams(
            dimension_semantics=("parallel",),
        ),
        cost_estimate=cost,
    )(x_p, wt, b2)

    # Slice away batch padding and the 10->16 lane padding outside the kernel.
    return out_padded[:B, :OUTPUT_SIZE]


if __name__ == "__main__":
    key = jax.random.PRNGKey(0)
    kx, kw, kb = jax.random.split(key, 3)

    # Deterministic synthetic parameters (PyTorch nn.Linear shapes).
    batch = 8
    x = jax.random.normal(kx, (batch, INPUT_SIZE), dtype=jnp.float32)
    weight = jax.random.normal(kw, (OUTPUT_SIZE, INPUT_SIZE), dtype=jnp.float32) * 0.1
    bias = jax.random.normal(kb, (OUTPUT_SIZE,), dtype=jnp.float32) * 0.1

    # --- f32 path: exact nn.Linear numerics ---
    out_f32 = jax.block_until_ready(svm_forward(x, weight, bias,
                                                input_dtype=jnp.float32))
    ref_f32 = x @ weight.T + bias
    assert out_f32.shape == (batch, OUTPUT_SIZE)
    assert jnp.allclose(out_f32, ref_f32, atol=1e-4, rtol=1e-4)

    # --- default bf16-stream path: f32 accumulation, bf16-rounded inputs ---
    out_bf16 = jax.block_until_ready(svm_forward(x, weight, bias))
    xb = x.astype(jnp.bfloat16).astype(jnp.float32)
    wb = weight.astype(jnp.bfloat16).astype(jnp.float32)
    ref_bf16 = xb @ wb.T + bias
    assert out_bf16.shape == (batch, OUTPUT_SIZE)
    assert jnp.allclose(out_bf16, ref_bf16, atol=1e-4, rtol=1e-4)
    assert jnp.allclose(out_bf16, ref_f32, atol=5e-2, rtol=5e-2)

    print("KERNEL_OK")
</pallas_src>

<mosaic_0001>
module attributes {stable_mosaic.version = 11 : i64} {
  func.func @_linear_kernel(%arg0: i32, %arg1: memref<8x60xf32, #tpu.memory_space<vmem>>, %arg2: memref<60x16xf32, #tpu.memory_space<vmem>>, %arg3: memref<1x16xf32, #tpu.memory_space<vmem>>, %arg4: memref<8x16xf32, #tpu.memory_space<vmem>>) attributes {dimension_semantics = [#tpu.dimension_semantics<parallel>], iteration_bounds = array<i64: 1>, scalar_prefetch = 0 : i64, scratch_operands = 0 : i64, tpu.core_type = #tpu.core_type<tc>, window_params = [{transform_indices = @transform_0, window_bounds = array<i64: 8, 60>}, {pipeline_mode = #tpu.pipeline_mode<synchronous>, transform_indices = @transform_1, window_bounds = array<i64: 60, 16>}, {pipeline_mode = #tpu.pipeline_mode<synchronous>, transform_indices = @transform_2, window_bounds = array<i64: 1, 16>}, {transform_indices = @transform_3, window_bounds = array<i64: 8, 16>}]} {
    %c0 = arith.constant 0 : index
    %c0_0 = arith.constant 0 : index
    %0 = vector.load %arg1[%c0, %c0_0] : memref<8x60xf32, #tpu.memory_space<vmem>>, vector<8x60xf32>
    %c0_1 = arith.constant 0 : index
    %c0_2 = arith.constant 0 : index
    %1 = vector.load %arg2[%c0_1, %c0_2] : memref<60x16xf32, #tpu.memory_space<vmem>>, vector<60x16xf32>
    %cst = arith.constant dense<0.000000e+00> : vector<8x16xf32>
    %2 = tpu.matmul %0, %1, %cst {dimension_numbers = #tpu.dot_dimension_numbers<[1], [0], [0], [1], [0, 0, 1, 1], [], []>} : vector<8x60xf32>, vector<60x16xf32>, vector<8x16xf32> -> vector<8x16xf32>
    %c0_3 = arith.constant 0 : index
    %c0_4 = arith.constant 0 : index
    %3 = vector.load %arg3[%c0_3, %c0_4] : memref<1x16xf32, #tpu.memory_space<vmem>>, vector<1x16xf32>
    %4 = vector.broadcast %3 : vector<1x16xf32> to vector<8x16xf32>
    %5 = arith.addf %2, %4 : vector<8x16xf32>
    %c0_5 = arith.constant 0 : index
    %c0_6 = arith.constant 0 : index
    %6 = vector.load %arg4[%c0_5, %c0_6] : memref<8x16xf32, #tpu.memory_space<vmem>>, vector<8x16xf32>
    tpu.vector_store %arg4[%c0_5, %c0_6], %5 {strides = array<i32>} : memref<8x16xf32, #tpu.memory_space<vmem>>, vector<8x16xf32>,
    return
  }
  func.func @transform_0(%arg0: i32) -> (i32, i32) {
    %c0_i32 = arith.constant 0 : i32
    %c0_i32_0 = arith.constant 0 : i32
    return %arg0, %c0_i32 : i32, i32
  }
  func.func @transform_1(%arg0: i32) -> (i32, i32) {
    %c0_i32 = arith.constant 0 : i32
    %c0_i32_0 = arith.constant 0 : i32
    %c0_i32_1 = arith.constant 0 : i32
    return %c0_i32, %c0_i32_0 : i32, i32
  }
  func.func @transform_2(%arg0: i32) -> (i32, i32) {
    %c0_i32 = arith.constant 0 : i32
    %c0_i32_0 = arith.constant 0 : i32
    %c0_i32_1 = arith.constant 0 : i32
    return %c0_i32, %c0_i32_0 : i32, i32
  }
  func.func @transform_3(%arg0: i32) -> (i32, i32) {
    %c0_i32 = arith.constant 0 : i32
    %c0_i32_0 = arith.constant 0 : i32
    return %arg0, %c0_i32 : i32, i32
  }
}

</mosaic_0001>

<llo_original>
// kernel: tpu_custom_call.1
$region0: #{tpu_custom_call.1}
  #allocation0 [shape = 'u32[]', space=smem, size = 0x4, offset = 0x4, fixed_abs, tag = 'smem constant byte address 0x4 - core index']
  #allocation1 [shape = 'u32[144,128]{1,0:T(1,128)}', space=vmem, size = 0x12000, scoped, tag = 'internal scratch']
  %s0 = inlined_call_operand.vmem [shape: f32[8,60], index: 0, kind: input, shape index: {}]
  %s1 = inlined_call_operand.vmem [shape: f32[60,16], index: 1, kind: input, shape index: {}]
  %s2 = inlined_call_operand.vmem [shape: f32[1,16], index: 2, kind: input, shape index: {}]
  %s3 = inlined_call_operand.hbm [shape: f32[8,16], index: 3, kind: output, shape index: {}]
  %s4 = sld [smem:[#allocation0]]
  $region22: #{tpu_custom_call.1} parent=0
    _
  %s6 = ssub.s32 1, %s4
  %s7 = scalar_select 0, %s6, %s4
  $region1: #{tpu_custom_call.1} parent=0
    #allocation2 [shape = 'u8[4096]{0}', space=vmem, size = 0x1000, scoped, tag = 'output window, operand 0, single buffered']
    #allocation3 [shape = 's32[1]{0}', space=sflag, size = 0x4, scoped, tag = 'scoped memory for tpu_custom_call.1']
    %8 = vsyncpa [#allocation3], 0
    // Predicated region
    $region2: #{tpu_custom_call.1} parent=1 // pred_check
      _
    $region3: #{tpu_custom_call.1} parent=1 // pred_check_branch
      %10 = sbr.rel (0) target = $region5
    $region4: #{tpu_custom_call.1} parent=1 // pred_region
      _
    $region5: #{tpu_custom_call.1} parent=1 // pred_fallthru
      _
    // Predicated region
    $region6: #{tpu_custom_call.1} parent=1 // pred_check
      _
    $region7: #{tpu_custom_call.1} parent=1 // pred_check_branch
      %12 = sbr.rel (0) target = $region9
    $region8: #{tpu_custom_call.1} parent=1 // pred_region
      _
    $region9: #{tpu_custom_call.1} parent=1 // pred_fallthru
      _
    // Predicated region
    $region10: #{tpu_custom_call.1} parent=1 // pred_check
      _
    $region11: #{tpu_custom_call.1} parent=1 // pred_check_branch
      %14 = sbr.rel (0) target = $region13
    $region12: #{tpu_custom_call.1} parent=1 // pred_region
      _
    $region13: #{tpu_custom_call.1} parent=1 // pred_fallthru
      _
    %v15 = vld [vmem:[%s0] sm:$0xff]
    %v16 = vld [vmem:[%s1] sm:$0xff]
    %v17 = vld [vmem:[%s1 + $0x8] sm:$0xff]
    %v18 = vld [vmem:[%s1 + $0x10] sm:$0xff]
    %v19 = vld [vmem:[%s1 + $0x18] sm:$0xff]
    %v20 = vld [vmem:[%s1 + $0x20] sm:$0xff]
    %v21 = vld [vmem:[%s1 + $0x28] sm:$0xff]
    %v22 = vld [vmem:[%s1 + $0x30] sm:$0xff]
    %v23 = vld [vmem:[%s1 + $0x38] sm:$0xf]
    %v24 = vld [vmem:[%s2] sm:$0x1]
    %v26 = vlaneseq
    %v27 = vshrl.u32 %v26, 7
    %v28 = vsub.s32 0, %v27
    %v29 = vrot.slane %v24, %v28
    %vm31 = vcmask 490496
    %v33 = vsel %vm31, %v15, 0
    %vm35 = vcmask 1043456
    %v37 = vsel %vm35, %v23, 0
    %39 = vmatprep.subr.mxu0 0.0
    %40 = vmatpush1.msra.mxu0 %v16
    %41 = vmatprep.subr.mxu0 0.0
    %42 = vmatpush1.msra.mxu0 %v17
    %43 = vmatprep.subr.mxu0 0.0
    %44 = vmatpush1.msra.mxu0 %v18
    %45 = vmatprep.subr.mxu0 0.0
    %46 = vmatpush1.msra.mxu0 %v19
    %47 = vmatprep.subr.mxu0 0.0
    %48 = vmatpush1.msra.mxu0 %v20
    %49 = vmatprep.subr.mxu0 0.0
    %50 = vmatpush1.msra.mxu0 %v21
    %51 = vmatprep.subr.mxu0 0.0
    %52 = vmatpush1.msra.mxu0 %v22
    %53 = vmatprep.subr.mxu0 0.0
    %54 = vmatpush1.msra.mxu0 %v37
    %55 = vmatprep.subr.mxu0 0.0
    %56 = vmatpush1.msra.mxu0 0.0
    %57 = vmatprep.subr.mxu0 0.0
    %58 = vmatpush1.msra.mxu0 0.0
    %59 = vmatprep.subr.mxu0 0.0
    %60 = vmatpush1.msra.mxu0 0.0
    %61 = vmatprep.subr.mxu0 0.0
    %62 = vmatpush1.msra.mxu0 0.0
    %63 = vmatprep.subr.mxu0 0.0
    %64 = vmatpush1.msra.mxu0 0.0
    %65 = vmatprep.subr.mxu0 0.0
    %66 = vmatpush1.msra.mxu0 0.0
    %67 = vmatprep.subr.mxu0 0.0
    %68 = vmatpush1.msra.mxu0 0.0
    %69 = vmatprep.subr.mxu0 0.0
    %70 = vmatpush1.msra.mxu0 0.0
    %71 = vmatprep.subr.mxu0 0.0
    %72 = vmatpush1.msra.mxu0 0.0
    %73 = vmatprep.subr.mxu0 0.0
    %74 = vmatpush1.msra.mxu0 0.0
    %75 = vmatprep.subr.mxu0 0.0
    %76 = vmatpush1.msra.mxu0 0.0
    %77 = vmatprep.subr.mxu0 0.0
    %78 = vmatpush1.msra.mxu0 0.0
    %79 = vmatprep.subr.mxu0 0.0
    %80 = vmatpush1.msra.mxu0 0.0
    %81 = vmatprep.subr.mxu0 0.0
    %82 = vmatpush1.msra.mxu0 0.0
    %83 = vmatprep.subr.mxu0 0.0
    %84 = vmatpush1.msra.mxu0 0.0
    %85 = vmatprep.subr.mxu0 0.0
    %86 = vmatpush1.msra.mxu0 0.0
    %87 = vmatprep.subr.mxu0 0.0
    %88 = vmatpush1.msra.mxu0 0.0
    %89 = vmatprep.subr.mxu0 0.0
    %90 = vmatpush1.msra.mxu0 0.0
    %91 = vmatprep.subr.mxu0 0.0
    %92 = vmatpush1.msra.mxu0 0.0
    %93 = vmatprep.subr.mxu0 0.0
    %94 = vmatpush1.msra.mxu0 0.0
    %95 = vmatprep.subr.mxu0 0.0
    %96 = vmatpush1.msra.mxu0 0.0
    %97 = vmatprep.subr.mxu0 0.0
    %98 = vmatpush1.msra.mxu0 0.0
    %99 = vmatprep.subr.mxu0 0.0
    %100 = vmatpush1.msra.mxu0 0.0
    %101 = vmatprep.subr.mxu0 0.0
    %102 = vmatpush1.msra.mxu0 0.0
    %103 = vmatprep.mubr.f32.mxu0 0.0
    %104 = vmatmul.mubr.f32.gmra.mrb[0].mxu0 %v33
    %v105 = vpop.f32.mrb[0].mxu0
    %v106 = vadd.f32 %v29, %v105
    %v107 = vpop.f32.mrb[0].mxu0
    %108 = vdwg.mxu0
    %vm109 = vcmask 130048
    %110 = vst.msk [vmem:[#allocation2] sm:$0xff] %vm109, %v106
    // Predicated region
    $region14: #{tpu_custom_call.1} parent=1 // pred_check
      _
    $region15: #{tpu_custom_call.1} parent=1 // pred_check_branch
      %112 = sbr.rel (0) target = $region17
    $region16: #{tpu_custom_call.1} parent=1 // pred_region
      %s114 = ssub.s32 128, 128
      %115 = vsyncadd [#allocation3], %s114
      %s117 = sshll.u32 [#allocation2], 4
      %s118 = int_to_ptr.vmem [resolvable:$true] %s117
      %120 = dma.vmem_to_hbm [thread:$0]  %s118, 128, %s3, [#allocation3]
    $region17: #{tpu_custom_call.1} parent=1 // pred_fallthru
      _
    // Predicated region
    $region18: #{tpu_custom_call.1} parent=1 // pred_check
      _
    $region19: #{tpu_custom_call.1} parent=1 // pred_check_branch
      %122 = sbr.rel (0) target = $region21
    $region20: #{tpu_custom_call.1} parent=1 // pred_region
      %123 = dma.done [#allocation3], 128
    $region21: #{tpu_custom_call.1} parent=1 // pred_fallthru
      _
    %124 = vsyncpa [#allocation3], 1

</llo_original>
